<compile_context>
chip_gen: v6e
topology: v6e:2x2x1
jax: 0.10.0
libtpu: 0.0.40
codegen_flags: <defaults>
</compile_context>

<pallas_src>
import math

import jax
import jax.numpy as jnp
from jax.experimental import pallas as pl
from jax.experimental.pallas import tpu as pltpu


def _scale_mul_kernel(x_ref, s_ref, o_ref):
    # x_ref / o_ref : (1, nb_tile, base, 128)  dense data block
    # s_ref         : (1, 1,       base, 128)  per-(sublane,lane) channel scale,
    #                 grid-invariant along the T axis (VMEM-resident per batch).
    s = s_ref[...]
    x = x_ref[...].astype(s.dtype)
    o_ref[...] = (x * s).astype(o_ref.dtype)  # broadcast over the group axis


def _plan_tiles(T, C, itemsize, max_block_bytes, B):
    """Choose the dense tiling.

    Returns (base, nb_tile, n_r, nb_total, P) where
      base     : rows per repeating scale period (multiple of 8, (base*128)%C==0)
      nb_tile  : base-row groups per x/out block
      n_r      : grid extent along the T axis
      nb_total : padded total number of base-row groups per batch
      P        : padded flat length per batch (= nb_total * base * 128)
    """
    g = math.gcd(128, C)
    base = math.lcm(8, C // g)                       # (base * 128) % C == 0
    total = T * C
    rows_needed = pl.cdiv(total, 128)
    blocks_needed = pl.cdiv(rows_needed, base)       # base-row groups needed

    group_bytes = base * 128 * itemsize
    budget_groups = max(1, max_block_bytes // group_bytes)
    n_r = pl.cdiv(blocks_needed, budget_groups)
    # v7x: prefer >= 2 total grid steps so both TensorCores get work.
    if B * n_r < 2 and blocks_needed > 1:
        n_r = 2
    nb_tile = pl.cdiv(blocks_needed, n_r)
    n_r = pl.cdiv(blocks_needed, nb_tile)            # drop empty tail tiles
    nb_total = n_r * nb_tile
    P = nb_total * base * 128
    return base, nb_tile, n_r, nb_total, P


def subject_layers_v2(x, subjects, emb_table, *,
                      max_block_bytes=4 << 20, compute_dtype=jnp.float32):
    """x: (B, T, C) float; subjects: (B, C) int; emb_table: (n_subjects, D).

    compute_dtype: dtype of the in-kernel multiply.  float32 (default) is safe
    everywhere (required on v5e); pass x.dtype for native bf16 on v6e / v7x.
    """
    B, T, C = x.shape
    itemsize = jnp.dtype(x.dtype).itemsize

    # Hoisted gather + D-reduction (factor-D less weight DMA than the einsum):
    #   out[b,t,c] = x[b,t,c] * sum_d emb_table[subjects[b,c], d]
    row_sums = jnp.sum(emb_table.astype(jnp.float32), axis=-1)   # (n_subjects,)
    scale = row_sums[subjects]                                    # (B, C) f32

    base, nb_tile, n_r, nb_total, P = _plan_tiles(
        T, C, itemsize, max_block_bytes, B)

    # Dense, lane-aligned view of x (free reshape + cheap zero pad of the tail).
    x_flat = x.reshape(B, T * C)
    pad = P - T * C
    if pad:
        x_flat = jnp.pad(x_flat, ((0, 0), (0, pad)))
    x4 = x_flat.reshape(B, nb_total, base, 128)

    # Tiny per-period scale tile: s_tile[b, 0, rr, j] = scale[b, (rr*128+j) % C].
    # Valid for every base-row group of every block because (base*128) % C == 0.
    lane_idx = jnp.arange(base * 128, dtype=jnp.int32) % C
    s_tile = jnp.take(scale, lane_idx, axis=1).reshape(B, 1, base, 128)
    s_tile = s_tile.astype(compute_dtype)

    block_bytes = nb_tile * base * 128 * itemsize
    vmem_limit = int(min(48 * 1024 * 1024,
                         max(32 * 1024 * 1024, 5 * block_bytes + (1 << 20))))

    out4 = pl.pallas_call(
        _scale_mul_kernel,
        out_shape=jax.ShapeDtypeStruct((B, nb_total, base, 128), x.dtype),
        grid_spec=pltpu.PrefetchScalarGridSpec(
            num_scalar_prefetch=0,
            grid=(B, n_r),
            in_specs=[
                pl.BlockSpec((1, nb_tile, base, 128), lambda b, r: (b, r, 0, 0)),
                # Scale block index is constant along r -> fetched once per batch.
                pl.BlockSpec((1, 1, base, 128), lambda b, r: (b, 0, 0, 0)),
            ],
            out_specs=pl.BlockSpec((1, nb_tile, base, 128),
                                   lambda b, r: (b, r, 0, 0)),
        ),
        compiler_params=pltpu.CompilerParams(
            dimension_semantics=("parallel", "parallel"),
            vmem_limit_bytes=vmem_limit),
    )(x4, s_tile)

    return out4.reshape(B, P)[:, :T * C].reshape(B, T, C)


def _reference(x, subjects, emb_table):
    return jnp.einsum('btc,bcd->btc', x, emb_table[subjects])


if __name__ == "__main__":
    key = jax.random.PRNGKey(0)

    # --- Case 1: typical small EEG-like shapes (C divides 128). ---
    B, T, C = 2, 32, 16
    n_subjects, D = 4, 32
    kx, ks, ke, key = jax.random.split(key, 4)
    x = jax.random.normal(kx, (B, T, C), dtype=jnp.float32)
    subjects = jax.random.randint(ks, (B, C), 0, n_subjects, dtype=jnp.int32)
    emb_table = jax.random.normal(ke, (n_subjects, D), dtype=jnp.float32)

    out = jax.block_until_ready(subject_layers_v2(x, subjects, emb_table))
    ref = _reference(x, subjects, emb_table)
    assert out.shape == (B, T, C)
    assert jnp.allclose(out, ref, atol=1e-5, rtol=1e-5), "case 1 mismatch"

    # --- Case 2: awkward shapes (prime T, C not a divisor of 128) exercises
    # the padding / base-period path.  ---
    B2, T2, C2 = 1, 37, 12
    kx2, ks2, key = jax.random.split(key, 3)
    x2 = jax.random.normal(kx2, (B2, T2, C2), dtype=jnp.float32)
    subjects2 = jax.random.randint(ks2, (B2, C2), 0, n_subjects, dtype=jnp.int32)
    out2 = jax.block_until_ready(subject_layers_v2(x2, subjects2, emb_table))
    ref2 = _reference(x2, subjects2, emb_table)
    assert jnp.allclose(out2, ref2, atol=1e-5, rtol=1e-5), "case 2 mismatch"

    # --- Case 3: force multi-tile grid along T (tiny block budget) so the
    # VMEM-resident grid-invariant scale block is exercised across r tiles. ---
    B3, T3, C3 = 2, 300, 12
    kx3, ks3, key = jax.random.split(key, 3)
    x3 = jax.random.normal(kx3, (B3, T3, C3), dtype=jnp.float32)
    subjects3 = jax.random.randint(ks3, (B3, C3), 0, n_subjects, dtype=jnp.int32)
    out3 = jax.block_until_ready(
        subject_layers_v2(x3, subjects3, emb_table, max_block_bytes=16 * 1024))
    ref3 = _reference(x3, subjects3, emb_table)
    assert jnp.allclose(out3, ref3, atol=1e-5, rtol=1e-5), "case 3 mismatch"

    print("KERNEL_OK")
</pallas_src>

<mosaic_0001>
module attributes {stable_mosaic.version = 11 : i64} {
  func.func @_scale_mul_kernel(%arg0: i32, %arg1: i32, %arg2: memref<1x1x8x128xf32, #tpu.memory_space<vmem>>, %arg3: memref<1x1x8x128xf32, #tpu.memory_space<vmem>>, %arg4: memref<1x1x8x128xf32, #tpu.memory_space<vmem>>) attributes {dimension_semantics = [#tpu.dimension_semantics<parallel>, #tpu.dimension_semantics<parallel>], iteration_bounds = array<i64: 2, 1>, scalar_prefetch = 0 : i64, scratch_operands = 0 : i64, tpu.core_type = #tpu.core_type<tc>, window_params = [{transform_indices = @transform_0, window_bounds = array<i64: 1, 1, 8, 128>}, {transform_indices = @transform_1, window_bounds = array<i64: 1, 1, 8, 128>}, {transform_indices = @transform_2, window_bounds = array<i64: 1, 1, 8, 128>}]} {
    %c0 = arith.constant 0 : index
    %c0_0 = arith.constant 0 : index
    %c0_1 = arith.constant 0 : index
    %c0_2 = arith.constant 0 : index
    %0 = vector.load %arg3[%c0, %c0_0, %c0_1, %c0_2] : memref<1x1x8x128xf32, #tpu.memory_space<vmem>>, vector<1x1x8x128xf32>
    %c0_3 = arith.constant 0 : index
    %c0_4 = arith.constant 0 : index
    %c0_5 = arith.constant 0 : index
    %c0_6 = arith.constant 0 : index
    %1 = vector.load %arg2[%c0_3, %c0_4, %c0_5, %c0_6] : memref<1x1x8x128xf32, #tpu.memory_space<vmem>>, vector<1x1x8x128xf32>
    %2 = arith.mulf %1, %0 : vector<1x1x8x128xf32>
    %c0_7 = arith.constant 0 : index
    %c0_8 = arith.constant 0 : index
    %c0_9 = arith.constant 0 : index
    %c0_10 = arith.constant 0 : index
    %3 = vector.load %arg4[%c0_7, %c0_8, %c0_9, %c0_10] : memref<1x1x8x128xf32, #tpu.memory_space<vmem>>, vector<1x1x8x128xf32>
    tpu.vector_store %arg4[%c0_7, %c0_8, %c0_9, %c0_10], %2 {strides = array<i32>} : memref<1x1x8x128xf32, #tpu.memory_space<vmem>>, vector<1x1x8x128xf32>,
    return
  }
  func.func @transform_0(%arg0: i32, %arg1: i32) -> (i32, i32, i32, i32) {
    %c0_i32 = arith.constant 0 : i32
    %c0_i32_0 = arith.constant 0 : i32
    %c0_i32_1 = arith.constant 0 : i32
    return %arg0, %arg1, %c0_i32, %c0_i32_0 : i32, i32, i32, i32
  }
  func.func @transform_1(%arg0: i32, %arg1: i32) -> (i32, i32, i32, i32) {
    %c0_i32 = arith.constant 0 : i32
    %c0_i32_0 = arith.constant 0 : i32
    %c0_i32_1 = arith.constant 0 : i32
    %c0_i32_2 = arith.constant 0 : i32
    return %arg0, %c0_i32, %c0_i32_0, %c0_i32_1 : i32, i32, i32, i32
  }
  func.func @transform_2(%arg0: i32, %arg1: i32) -> (i32, i32, i32, i32) {
    %c0_i32 = arith.constant 0 : i32
    %c0_i32_0 = arith.constant 0 : i32
    %c0_i32_1 = arith.constant 0 : i32
    return %arg0, %arg1, %c0_i32, %c0_i32_0 : i32, i32, i32, i32
  }
}

</mosaic_0001>

<llo_original>
// kernel: tpu_custom_call.1
$region0: #{tpu_custom_call.1}
  #allocation0 [shape = 'u32[]', space=smem, size = 0x4, offset = 0x4, fixed_abs, tag = 'smem constant byte address 0x4 - core index']
  #allocation1 [shape = 'u32[144,128]{1,0:T(1,128)}', space=vmem, size = 0x12000, scoped, tag = 'internal scratch']
  %s0 = inlined_call_operand.hbm [shape: f32[2,1,8,128], index: 0, kind: input, shape index: {}]
  %s1 = inlined_call_operand.hbm [shape: f32[2,1,8,128], index: 1, kind: input, shape index: {}]
  %s2 = inlined_call_operand.hbm [shape: f32[2,1,8,128], index: 2, kind: output, shape index: {}]
  %s3 = sld [smem:[#allocation0]]
  $region49: #{tpu_custom_call.1} parent=0
    _
  %s5 = ssub.s32 1, %s3
  %s6 = scalar_select 0, %s5, %s3
  $region1: #{tpu_custom_call.1} parent=0
    #allocation2 [shape = 'u8[8192]{0}', space=vmem, size = 0x2000, scoped, tag = 'input window, operand 0']
    #allocation3 [shape = 's32[2]{0}', space=sflag, size = 0x8, scoped, tag = 'scoped memory for tpu_custom_call.1']
    #allocation4 [shape = 's32[2]{0}', space=sflag, size = 0x8, scoped, tag = 'scoped memory for tpu_custom_call.1']
    #allocation5 [shape = 'u8[8192]{0}', space=vmem, size = 0x2000, scoped, tag = 'input window, operand 1']
    #allocation6 [shape = 's32[2]{0}', space=sflag, size = 0x8, scoped, tag = 'scoped memory for tpu_custom_call.1']
    #allocation7 [shape = 'u8[8192]{0}', space=vmem, size = 0x2000, scoped, tag = 'output window, operand 0']
    %7 = vsyncpa [#allocation3], 0
    %s8 = scalar_lea.sflag [#allocation3], 1
    %9 = vsyncpa %s8, 0
    %10 = vsyncpa [#allocation6], 0
    %s11 = scalar_lea.sflag [#allocation6], 1
    %12 = vsyncpa %s11, 0
    %13 = vsyncpa [#allocation4], 0
    %s14 = scalar_lea.sflag [#allocation4], 1
    %15 = vsyncpa %s14, 0
    loop: start=0, step=1, limit=4
    $region2: #{tpu_custom_call.1} parent=1 // loop_pre_header
      _
    $region3: #{tpu_custom_call.1} parent=1 // loop_header
      %s17 = sphi 0, %s21
      %p18 = scmp.ge.s32.totalorder %s17, 4
      %s24 = sphi 0, %s36
      %s25 = sphi 0, %s32
      %s26 = sphi 0, %s24
      %s27 = sphi 0, %s25
      %s28 = sphi 0, %s26
      %s29 = sphi 0, %s27
      %s41 = sphi 0, %s43
      %s44 = sphi 0, %s41
      %s45 = sphi 0, %s44
      %s61 = sphi 0, %s45
      %s67 = sphi 0, %s69
      %s70 = sphi 0, %s67
      %s71 = sphi 0, %s70
      %s87 = sphi 0, %s71
      %s95 = sphi 0, %s97
      %s98 = sphi 0, %s95
      %s99 = sphi 0, %s98
      %s115 = sphi 0, %s99
    $region4: #{tpu_custom_call.1} parent=1 // loop_header_branch
      %20 = sbr.rel (%p18) target = $region8
    $region5: #{tpu_custom_call.1} parent=1 // loop_body
      %s22 = ssub.s32 %s17, 1
      %s23 = ssub.s32 %s17, 2
      %s30 = sadd.s32 1, %s25
      %p31 = scmp.ge.s32.totalorder %s30, 1
      %s32 = scalar_select %p31, 0, %s30
      %s33 = sadd.s32 1, %s24
      %s34 = scalar_select %p31, %s33, %s24
      %p35 = scmp.ge.s32.totalorder %s34, 2
      %s36 = scalar_select %p35, 0, %s34
      %s37 = ssub.s32 %s24, %s36
      %s38 = ssub.s32 %s25, %s32
      %s39 = sor.u32 %s37, %s38
      %p40 = scmp.eq.s32.totalorder %s39, 0
      %s42 = sadd.s32 %s41, 1
      %s43 = scalar_select %p40, %s41, %s42
      %p46 = pneg %p40
      %p47 = scmp.eq.s32.totalorder %s17, 1
      %p48 = por %p46, %p47
      %p49 = scmp.ne.s32.totalorder %s41, %s44
      %p50 = scmp.eq.s32.totalorder %s17, 0
      %p51 = por %p49, %p50
      %p52 = scmp.ne.s32.totalorder %s41, %s44
      %p53 = scmp.eq.s32.totalorder %s22, 1
      %p54 = por %p52, %p53
      %p55 = scmp.ne.s32.totalorder %s44, %s45
      %p56 = scmp.eq.s32.totalorder %s22, 0
      %p57 = por %p55, %p56
      %p58 = scmp.ne.s32.totalorder %s44, %s45
      %p59 = scmp.eq.s32.totalorder %s23, 1
      %p60 = por %p58, %p59
      %p62 = scmp.ne.s32.totalorder %s45, %s61
      %p63 = scmp.eq.s32.totalorder %s23, 0
      %p64 = por %p62, %p63
      %s65 = ssub.s32 %s24, %s36
      %p66 = scmp.eq.s32.totalorder %s65, 0
      %s68 = sadd.s32 %s67, 1
      %s69 = scalar_select %p66, %s67, %s68
      %p72 = pneg %p66
      %p73 = scmp.eq.s32.totalorder %s17, 1
      %p74 = por %p72, %p73
      %p75 = scmp.ne.s32.totalorder %s67, %s70
      %p76 = scmp.eq.s32.totalorder %s17, 0
      %p77 = por %p75, %p76
      %p78 = scmp.ne.s32.totalorder %s67, %s70
      %p79 = scmp.eq.s32.totalorder %s22, 1
      %p80 = por %p78, %p79
      %p81 = scmp.ne.s32.totalorder %s70, %s71
      %p82 = scmp.eq.s32.totalorder %s22, 0
      %p83 = por %p81, %p82
      %p84 = scmp.ne.s32.totalorder %s70, %s71
      %p85 = scmp.eq.s32.totalorder %s23, 1
      %p86 = por %p84, %p85
      %p88 = scmp.ne.s32.totalorder %s71, %s87
      %p89 = scmp.eq.s32.totalorder %s23, 0
      %p90 = por %p88, %p89
      %s91 = ssub.s32 %s24, %s36
      %s92 = ssub.s32 %s25, %s32
      %s93 = sor.u32 %s91, %s92
      %p94 = scmp.eq.s32.totalorder %s93, 0
      %s96 = sadd.s32 %s95, 1
      %s97 = scalar_select %p94, %s95, %s96
      %p100 = pneg %p94
      %p101 = scmp.eq.s32.totalorder %s17, 1
      %p102 = por %p100, %p101
      %p103 = scmp.ne.s32.totalorder %s95, %s98
      %p104 = scmp.eq.s32.totalorder %s17, 0
      %p105 = por %p103, %p104
      %p106 = scmp.ne.s32.totalorder %s95, %s98
      %p107 = scmp.eq.s32.totalorder %s22, 1
      %p108 = por %p106, %p107
      %p109 = scmp.ne.s32.totalorder %s98, %s99
      %p110 = scmp.eq.s32.totalorder %s22, 0
      %p111 = por %p109, %p110
      %p112 = scmp.ne.s32.totalorder %s98, %s99
      %p113 = scmp.eq.s32.totalorder %s23, 1
      %p114 = por %p112, %p113
      %p116 = scmp.ne.s32.totalorder %s99, %s115
      %p117 = scmp.eq.s32.totalorder %s23, 0
      %p118 = por %p116, %p117
      %p119 = scmp.le.s32.totalorder 1, %s17
      %p120 = scmp.lt.s32.totalorder %s17, 3
      %p121 = pnand %p119, %p120
      %p122 = pneg %p121
      // Predicated region
      $region9: #{tpu_custom_call.1} parent=5 // pred_check
        _
      $region10: #{tpu_custom_call.1} parent=5 // pred_check_branch
        %124 = sbr.rel (%p121) target = $region12
      $region11: #{tpu_custom_call.1} parent=5 // pred_region
        %s125 = ssub.s32 %s17, 1
      $region12: #{tpu_custom_call.1} parent=5 // pred_fallthru
        _
      %p126 = scmp.lt.s32.totalorder %s17, 2
      // Predicated region
      $region13: #{tpu_custom_call.1} parent=5 // pred_check
        %p127 = pneg %p126
      $region14: #{tpu_custom_call.1} parent=5 // pred_check_branch
        %129 = sbr.rel (%p127) target = $region16
      $region15: #{tpu_custom_call.1} parent=5 // pred_region
        // Predicated region
        $region17: #{tpu_custom_call.1} parent=15 // pred_check
          %p130 = pneg %p51
        $region18: #{tpu_custom_call.1} parent=15 // pred_check_branch
          %132 = sbr.rel (%p130) target = $region20
        $region19: #{tpu_custom_call.1} parent=15 // pred_region
          %s133 = sand.u32 %s41, 1
          %s134 = scalar_lea.sflag [#allocation3], %s133
          %s135 = sand.u32 %s41, 1
          %s136 = smul.addr %s135, 8
          %s137 = scalar_lea.vmem [#allocation2], %s136
          %s139 = ssub.s32 128, 128
          %140 = vsyncadd %s134, %s139
          %s141 = sadd.s32 %s25, %s24
          %s142 = smul.addr %s141, 128
          %s143 = scalar_lea.hbm %s0, %s142
          %s145 = sshll.u32 %s137, 4
          %s146 = int_to_ptr.vmem [resolvable:$true] %s145
          %148 = dma.hbm_to_vmem [thread:$0]  %s143, 128, %s146, %s134
        $region20: #{tpu_custom_call.1} parent=15 // pred_fallthru
          _
        // Predicated region
        $region21: #{tpu_custom_call.1} parent=15 // pred_check
          %p149 = pneg %p77
        $region22: #{tpu_custom_call.1} parent=15 // pred_check_branch
          %151 = sbr.rel (%p149) target = $region24
        $region23: #{tpu_custom_call.1} parent=15 // pred_region
          %s152 = sand.u32 %s67, 1
          %s153 = scalar_lea.sflag [#allocation6], %s152
          %s154 = sand.u32 %s67, 1
          %s155 = smul.addr %s154, 8
          %s156 = scalar_lea.vmem [#allocation5], %s155
          %s158 = ssub.s32 128, 128
          %159 = vsyncadd %s153, %s158
          %s160 = smul.addr %s24, 128
          %s161 = scalar_lea.hbm %s1, %s160
          %s163 = sshll.u32 %s156, 4
          %s164 = int_to_ptr.vmem [resolvable:$true] %s163
          %166 = dma.hbm_to_vmem [thread:$0]  %s161, 128, %s164, %s153
        $region24: #{tpu_custom_call.1} parent=15 // pred_fallthru
          _
      $region16: #{tpu_custom_call.1} parent=5 // pred_fallthru
        _
      %p167 = scmp.le.s32.totalorder 1, %s17
      %p168 = scmp.lt.s32.totalorder %s17, 3
      %p169 = pnand %p167, %p168
      %p170 = pneg %p169
      // Predicated region
      $region25: #{tpu_custom_call.1} parent=5 // pred_check
        _
      $region26: #{tpu_custom_call.1} parent=5 // pred_check_branch
        %172 = sbr.rel (%p169) target = $region28
      $region27: #{tpu_custom_call.1} parent=5 // pred_region
        %s173 = ssub.s32 %s17, 1
        %s174 = sand.u32 %s44, 1
        %s175 = scalar_lea.sflag [#allocation3], %s174
        %s176 = sand.u32 %s44, 1
        %s177 = smul.addr %s176, 8
        %s178 = scalar_lea.vmem [#allocation2], %s177
        // Predicated region
        $region29: #{tpu_custom_call.1} parent=27 // pred_check
          %p179 = pneg %p57
        $region30: #{tpu_custom_call.1} parent=27 // pred_check_branch
          %181 = sbr.rel (%p179) target = $region32
        $region31: #{tpu_custom_call.1} parent=27 // pred_region
          %182 = dma.done %s175, 128
        $region32: #{tpu_custom_call.1} parent=27 // pred_fallthru
          _
        %s183 = sand.u32 %s70, 1
        %s184 = scalar_lea.sflag [#allocation6], %s183
        %s185 = sand.u32 %s70, 1
        %s186 = smul.addr %s185, 8
        %s187 = scalar_lea.vmem [#allocation5], %s186
        // Predicated region
        $region33: #{tpu_custom_call.1} parent=27 // pred_check
          %p188 = pneg %p83
        $region34: #{tpu_custom_call.1} parent=27 // pred_check_branch
          %190 = sbr.rel (%p188) target = $region36
        $region35: #{tpu_custom_call.1} parent=27 // pred_region
          %191 = dma.done %s184, 128
        $region36: #{tpu_custom_call.1} parent=27 // pred_fallthru
          _
        %s192 = sand.u32 %s44, 1
        %s193 = scalar_lea.sflag [#allocation3], %s192
        %s194 = sand.u32 %s44, 1
        %s195 = smul.addr %s194, 8
        %s196 = scalar_lea.vmem [#allocation2], %s195
        %p197 = pneg %p57
        %p198 = pneg %p54
        %s199 = sand.u32 %s70, 1
        %s200 = scalar_lea.sflag [#allocation6], %s199
        %s201 = sand.u32 %s70, 1
        %s202 = smul.addr %s201, 8
        %s203 = scalar_lea.vmem [#allocation5], %s202
        %p204 = pneg %p83
        %p205 = pneg %p80
        %p206 = pneg %p111
        %p207 = pneg %p108
        %s208 = sand.u32 %s98, 1
        %s209 = scalar_lea.sflag [#allocation4], %s208
        %s210 = sand.u32 %s98, 1
        %s211 = smul.addr %s210, 8
        %s212 = scalar_lea.vmem [#allocation7], %s211
        %v213 = vld [vmem:[%s187] sm:$0xff]
        %v214 = vld [vmem:[%s178] sm:$0xff]
        %v215 = vmul.f32 %v214, %v213
        %216 = vst [vmem:[%s212] sm:$0xff] %v215
        %s217 = sand.u32 %s98, 1
        %s218 = scalar_lea.sflag [#allocation4], %s217
        %s219 = sand.u32 %s98, 1
        %s220 = smul.addr %s219, 8
        %s221 = scalar_lea.vmem [#allocation7], %s220
        // Predicated region
        $region37: #{tpu_custom_call.1} parent=27 // pred_check
          %p222 = pneg %p108
        $region38: #{tpu_custom_call.1} parent=27 // pred_check_branch
          %224 = sbr.rel (%p222) target = $region40
        $region39: #{tpu_custom_call.1} parent=27 // pred_region
          %s226 = ssub.s32 128, 128
          %227 = vsyncadd %s218, %s226
          %s228 = sadd.s32 %s27, %s26
          %s229 = smul.addr %s228, 128
          %s230 = scalar_lea.hbm %s2, %s229
          %s232 = sshll.u32 %s221, 4
          %s233 = int_to_ptr.vmem [resolvable:$true] %s232
          %235 = dma.vmem_to_hbm [thread:$0]  %s233, 128, %s230, %s218
        $region40: #{tpu_custom_call.1} parent=27 // pred_fallthru
          _
      $region28: #{tpu_custom_call.1} parent=5 // pred_fallthru
        _
      %p236 = scmp.le.s32.totalorder 2, %s17
      // Predicated region
      $region41: #{tpu_custom_call.1} parent=5 // pred_check
        %p237 = pneg %p236
      $region42: #{tpu_custom_call.1} parent=5 // pred_check_branch
        %239 = sbr.rel (%p237) target = $region44
      $region43: #{tpu_custom_call.1} parent=5 // pred_region
        %s240 = ssub.s32 %s17, 2
        // Predicated region
        $region45: #{tpu_custom_call.1} parent=43 // pred_check
          %p241 = pneg %p114
        $region46: #{tpu_custom_call.1} parent=43 // pred_check_branch
          %243 = sbr.rel (%p241) target = $region48
        $region47: #{tpu_custom_call.1} parent=43 // pred_region
          %s244 = sand.u32 %s99, 1
          %s245 = scalar_lea.sflag [#allocation4], %s244
          %s246 = sand.u32 %s99, 1
          %s247 = smul.addr %s246, 8
          %s248 = scalar_lea.vmem [#allocation7], %s247
          %249 = dma.done %s245, 128
        $region48: #{tpu_custom_call.1} parent=43 // pred_fallthru
          _
      $region44: #{tpu_custom_call.1} parent=5 // pred_fallthru
        _
    $region6: #{tpu_custom_call.1} parent=1 // loop_footer
      %s21 = sadd.s32 1, %s17
    $region7: #{tpu_custom_call.1} parent=1 // loop_footer_branch
      %16 = sbr.rel target = $region3
    $region8: #{tpu_custom_call.1} parent=1 // loop_exit
      _
    %250 = vsyncpa [#allocation3], 1
    %s251 = scalar_lea.sflag [#allocation3], 1
    %252 = vsyncpa %s251, 1
    %253 = vsyncpa [#allocation6], 1
    %s254 = scalar_lea.sflag [#allocation6], 1
    %255 = vsyncpa %s254, 1
    %256 = vsyncpa [#allocation4], 1
    %s257 = scalar_lea.sflag [#allocation4], 1
    %258 = vsyncpa %s257, 1

</llo_original>
